<compile_context>
chip_gen: v6e
topology: v6e:2x2x1
jax: 0.10.0
libtpu: 0.0.40
codegen_flags: <defaults>
</compile_context>

<pallas_src>
import functools

import jax
import jax.numpy as jnp
from jax import lax
from jax.experimental import pallas as pl
from jax.experimental.pallas import tpu as pltpu

_MASK_VALUE = jnp.finfo(jnp.float32).min  # finite "-inf": NaN-safe in softmax


def _head_kernel(x_ref, wq_ref, wk_ref, wv_ref, out_ref, attn_ref,
                 *, apply_masking: bool, scale: float):
    bb, t, c = x_ref.shape

    # ---- q/k/v projections on the flattened (BB*T, C) slab (bf16 MXU, f32 acc)
    x2 = x_ref[...].reshape(bb * t, c)                        # bf16 (BB*T, C)
    q = jnp.dot(x2, wq_ref[...], preferred_element_type=jnp.float32)
    k = jnp.dot(x2, wk_ref[...], preferred_element_type=jnp.float32)
    v = jnp.dot(x2, wv_ref[...], preferred_element_type=jnp.float32)

    # Fold the 1/sqrt(C) scale into q (T*C mults instead of T*T).
    q = (q * scale).reshape(bb, t, c).astype(jnp.bfloat16)
    k = k.reshape(bb, t, c).astype(jnp.bfloat16)
    v = v.reshape(bb, t, c).astype(jnp.bfloat16)

    # ---- scores: contract the C axis of q and k directly (no k.T transpose).
    sim = lax.dot_general(
        q, k,
        dimension_numbers=(((2,), (2,)), ((0,), (0,))),       # (BB, T, T) f32
        preferred_element_type=jnp.float32)

    if apply_masking:
        # In-kernel causal mask (row >= col); no HBM tril buffer needed.
        row = lax.broadcasted_iota(jnp.int32, (t, t), 0)
        col = lax.broadcasted_iota(jnp.int32, (t, t), 1)
        causal = (row >= col)[None, :, :]                     # (1, T, T) bool
        sim = jnp.where(causal, sim, _MASK_VALUE)

    # ---- numerically-stable softmax; reciprocal goes to the (idle) EUP slot.
    m = jnp.max(sim, axis=-1, keepdims=True)
    p = jnp.exp(sim - m)
    denom = jnp.sum(p, axis=-1, keepdims=True)
    attn = p * pl.reciprocal(denom, approx=True)              # (BB, T, T) f32

    # ---- attention @ v (bf16 MXU, f32 acc).
    out = lax.dot_general(
        attn.astype(jnp.bfloat16), v,
        dimension_numbers=(((2,), (1,)), ((0,), (0,))),       # (BB, T, C)
        preferred_element_type=jnp.float32)

    attn_ref[...] = attn.astype(attn_ref.dtype)
    out_ref[...] = out.astype(out_ref.dtype)


def _choose_batch_block(batch, max_bb=8):
    bb = min(batch, max_bb)
    while batch % bb:
        bb -= 1
    return bb


def head_forward(x, wq, wk, wv, *, apply_masking=False, batch_block=None,
                 vmem_limit_bytes=None):
    """Pallas equivalent of Head.forward.

    Args:
      x:        (B, T, C) float32 input.
      wq/wk/wv: (C, C) PyTorch-layout Linear weights, i.e. y = x @ W.T.
      apply_masking: static flag, same as Head.applyMasking.
      batch_block: batch elements per grid step (must divide B); auto if None.
      vmem_limit_bytes: optionally raise the scoped VMEM limit for large T/C.

    Returns:
      (output, attention) with shapes (B, T, C) and (B, T, T), float32.
    """
    B, T, C = x.shape
    scale = float(C) ** (-0.5)
    BB = batch_block if batch_block is not None else _choose_batch_block(B)
    assert B % BB == 0, "batch_block must divide batch"

    # One-time glue: transpose to (in, out) and cast MXU operands to bf16
    # (halves the HBM read traffic for x and weights as well).
    x_bf = x.astype(jnp.bfloat16)
    wq_t = wq.T.astype(jnp.bfloat16)
    wk_t = wk.T.astype(jnp.bfloat16)
    wv_t = wv.T.astype(jnp.bfloat16)

    kernel = functools.partial(_head_kernel,
                               apply_masking=apply_masking,
                               scale=scale)

    # TODO(synk): for long sequences (large T) on v7x, add a second grid axis
    # tiling the query dimension so the (BB, T, T) attention block fits the
    # 64 MiB VMEM; not needed at these demo shapes.
    grid_spec = pltpu.PrefetchScalarGridSpec(
        num_scalar_prefetch=0,
        grid=(B // BB,),
        in_specs=[
            pl.BlockSpec((BB, T, C), lambda b: (b, 0, 0)),   # x (bf16)
            pl.BlockSpec((C, C), lambda b: (0, 0)),          # wq^T (bf16)
            pl.BlockSpec((C, C), lambda b: (0, 0)),          # wk^T (bf16)
            pl.BlockSpec((C, C), lambda b: (0, 0)),          # wv^T (bf16)
        ],
        out_specs=[
            pl.BlockSpec((BB, T, C), lambda b: (b, 0, 0)),   # output
            pl.BlockSpec((BB, T, T), lambda b: (b, 0, 0)),   # attention
        ],
    )

    compiler_params = pltpu.CompilerParams(
        dimension_semantics=("parallel",),
        vmem_limit_bytes=vmem_limit_bytes)

    out, attn = pl.pallas_call(
        kernel,
        out_shape=(
            jax.ShapeDtypeStruct((B, T, C), jnp.float32),
            jax.ShapeDtypeStruct((B, T, T), jnp.float32),
        ),
        grid_spec=grid_spec,
        compiler_params=compiler_params,
    )(x_bf, wq_t, wk_t, wv_t)
    return out, attn


def head_reference(x, wq, wk, wv, tril, *, apply_masking=False):
    """Pure-JAX (float32) reference mirroring the PyTorch forward exactly."""
    B, T, C = x.shape
    q = x @ wq.T
    k = x @ wk.T
    v = x @ wv.T
    sim = q @ jnp.swapaxes(k, -2, -1) * (C ** -0.5)
    if apply_masking:
        sim = jnp.where(tril == 0.0, -jnp.inf, sim)
    attn = jax.nn.softmax(sim, axis=-1)
    out = attn @ v
    return out, attn


if __name__ == "__main__":
    # Small shapes consistent with the module: head_size == C (the Linear is
    # head_size -> head_size and is applied to x directly), block_size == T.
    B, T, C = 2, 8, 32
    apply_masking = True   # exercise the causal-mask branch

    key = jax.random.PRNGKey(0)
    kx, kq, kk, kv = jax.random.split(key, 4)

    x = jax.random.normal(kx, (B, T, C), dtype=jnp.float32)
    # Deterministic Linear weights, PyTorch layout (out_features, in_features).
    wq = jax.random.normal(kq, (C, C), dtype=jnp.float32) * (C ** -0.5)
    wk = jax.random.normal(kk, (C, C), dtype=jnp.float32) * (C ** -0.5)
    wv = jax.random.normal(kv, (C, C), dtype=jnp.float32) * (C ** -0.5)
    tril = jnp.tril(jnp.ones((T, T), dtype=jnp.float32))

    # TODO(synk): ALiBi branch is dead in the reference (alibi_slope is None),
    # so it is intentionally not implemented in the kernel.

    out, attn = head_forward(x, wq, wk, wv, apply_masking=apply_masking)
    out = jax.block_until_ready(out)
    attn = jax.block_until_ready(attn)

    ref_out, ref_attn = head_reference(x, wq, wk, wv, tril,
                                       apply_masking=apply_masking)
    # bf16 MXU inputs (f32 accumulation) + approx reciprocal -> loosen the
    # f32-reference tolerances accordingly.
    assert jnp.allclose(out, ref_out, atol=2e-2, rtol=2e-2)
    assert jnp.allclose(attn, ref_attn, atol=2e-2, rtol=2e-2)

    print("KERNEL_OK")
</pallas_src>

<mosaic_0001>
module attributes {stable_mosaic.version = 11 : i64} {
  func.func @_head_kernel(%arg0: i32, %arg1: memref<2x8x32xbf16, #tpu.memory_space<vmem>>, %arg2: memref<32x32xbf16, #tpu.memory_space<vmem>>, %arg3: memref<32x32xbf16, #tpu.memory_space<vmem>>, %arg4: memref<32x32xbf16, #tpu.memory_space<vmem>>, %arg5: memref<2x8x32xf32, #tpu.memory_space<vmem>>, %arg6: memref<2x8x8xf32, #tpu.memory_space<vmem>>) attributes {dimension_semantics = [#tpu.dimension_semantics<parallel>], iteration_bounds = array<i64: 1>, scalar_prefetch = 0 : i64, scratch_operands = 0 : i64, tpu.core_type = #tpu.core_type<tc>, window_params = [{transform_indices = @transform_0, window_bounds = array<i64: 2, 8, 32>}, {pipeline_mode = #tpu.pipeline_mode<synchronous>, transform_indices = @transform_1, window_bounds = array<i64: 32, 32>}, {pipeline_mode = #tpu.pipeline_mode<synchronous>, transform_indices = @transform_2, window_bounds = array<i64: 32, 32>}, {pipeline_mode = #tpu.pipeline_mode<synchronous>, transform_indices = @transform_3, window_bounds = array<i64: 32, 32>}, {transform_indices = @transform_4, window_bounds = array<i64: 2, 8, 32>}, {transform_indices = @transform_5, window_bounds = array<i64: 2, 8, 8>}]} {
    %c0 = arith.constant 0 : index
    %c0_0 = arith.constant 0 : index
    %c0_1 = arith.constant 0 : index
    %0 = vector.load %arg1[%c0, %c0_0, %c0_1] : memref<2x8x32xbf16, #tpu.memory_space<vmem>>, vector<2x8x32xbf16>
    %1 = vector.shape_cast %0 : vector<2x8x32xbf16> to vector<16x32xbf16>
    %c0_2 = arith.constant 0 : index
    %c0_3 = arith.constant 0 : index
    %2 = vector.load %arg2[%c0_2, %c0_3] : memref<32x32xbf16, #tpu.memory_space<vmem>>, vector<32x32xbf16>
    %cst = arith.constant dense<0.000000e+00> : vector<16x32xf32>
    %3 = tpu.matmul %1, %2, %cst {dimension_numbers = #tpu.dot_dimension_numbers<[1], [0], [0], [1], [0, 0, 1, 1], [], []>} : vector<16x32xbf16>, vector<32x32xbf16>, vector<16x32xf32> -> vector<16x32xf32>
    %c0_4 = arith.constant 0 : index
    %c0_5 = arith.constant 0 : index
    %4 = vector.load %arg3[%c0_4, %c0_5] : memref<32x32xbf16, #tpu.memory_space<vmem>>, vector<32x32xbf16>
    %cst_6 = arith.constant dense<0.000000e+00> : vector<16x32xf32>
    %5 = tpu.matmul %1, %4, %cst_6 {dimension_numbers = #tpu.dot_dimension_numbers<[1], [0], [0], [1], [0, 0, 1, 1], [], []>} : vector<16x32xbf16>, vector<32x32xbf16>, vector<16x32xf32> -> vector<16x32xf32>
    %c0_7 = arith.constant 0 : index
    %c0_8 = arith.constant 0 : index
    %6 = vector.load %arg4[%c0_7, %c0_8] : memref<32x32xbf16, #tpu.memory_space<vmem>>, vector<32x32xbf16>
    %cst_9 = arith.constant dense<0.000000e+00> : vector<16x32xf32>
    %7 = tpu.matmul %1, %6, %cst_9 {dimension_numbers = #tpu.dot_dimension_numbers<[1], [0], [0], [1], [0, 0, 1, 1], [], []>} : vector<16x32xbf16>, vector<32x32xbf16>, vector<16x32xf32> -> vector<16x32xf32>
    %cst_10 = arith.constant 0.176776692 : f32
    %8 = vector.broadcast %cst_10 : f32 to vector<16x32xf32>
    %9 = arith.mulf %3, %8 : vector<16x32xf32>
    %10 = vector.shape_cast %9 : vector<16x32xf32> to vector<2x8x32xf32>
    %11 = arith.truncf %10 : vector<2x8x32xf32> to vector<2x8x32xbf16>
    %12 = vector.shape_cast %5 : vector<16x32xf32> to vector<2x8x32xf32>
    %13 = arith.truncf %12 : vector<2x8x32xf32> to vector<2x8x32xbf16>
    %14 = vector.shape_cast %7 : vector<16x32xf32> to vector<2x8x32xf32>
    %15 = arith.truncf %14 : vector<2x8x32xf32> to vector<2x8x32xbf16>
    %cst_11 = arith.constant dense<0.000000e+00> : vector<2x8x8xf32>
    %16 = tpu.matmul %11, %13, %cst_11 {dimension_numbers = #tpu.dot_dimension_numbers<[2], [2], [1], [1], [0, 0, 0, 1, 1, 1], [0], [0]>} : vector<2x8x32xbf16>, vector<2x8x32xbf16>, vector<2x8x8xf32> -> vector<2x8x8xf32>
    %17 = tpu.iota {dimensions = array<i32: 0>} : vector<8x8xi32>
    %18 = tpu.iota {dimensions = array<i32: 1>} : vector<8x8xi32>
    %19 = arith.cmpi sge, %17, %18 : vector<8x8xi32>
    %20 = vector.shape_cast %19 : vector<8x8xi1> to vector<1x8x8xi1>
    %cst_12 = arith.constant -3.40282347E+38 : f32
    %21 = vector.shape_cast %20 : vector<1x8x8xi1> to vector<1x8x8xi1>
    %22 = vector.broadcast %21 : vector<1x8x8xi1> to vector<2x8x8xi1>
    %23 = vector.broadcast %cst_12 : f32 to vector<2x8x8xf32>
    %24 = arith.select %22, %16, %23 : vector<2x8x8xi1>, vector<2x8x8xf32>
    %cst_13 = arith.constant dense<0xFF800000> : vector<2x8xf32>
    %25 = vector.multi_reduction <maximumf>, %24, %cst_13 [2] : vector<2x8x8xf32> to vector<2x8xf32>
    %26 = vector.shape_cast %25 : vector<2x8xf32> to vector<2x8x1xf32>
    %27 = vector.broadcast %26 : vector<2x8x1xf32> to vector<2x8x8xf32>
    %28 = arith.subf %24, %27 : vector<2x8x8xf32>
    %29 = math.exp %28 : vector<2x8x8xf32>
    %cst_14 = arith.constant dense<0.000000e+00> : vector<2x8xf32>
    %30 = vector.multi_reduction <add>, %29, %cst_14 [2] : vector<2x8x8xf32> to vector<2x8xf32>
    %31 = vector.shape_cast %30 : vector<2x8xf32> to vector<2x8x1xf32>
    %32 = tpu.reciprocal %31 {approx = true} : vector<2x8x1xf32> -> vector<2x8x1xf32>
    %33 = vector.broadcast %32 : vector<2x8x1xf32> to vector<2x8x8xf32>
    %34 = arith.mulf %29, %33 : vector<2x8x8xf32>
    %35 = arith.truncf %34 : vector<2x8x8xf32> to vector<2x8x8xbf16>
    %cst_15 = arith.constant dense<0.000000e+00> : vector<2x8x32xf32>
    %36 = tpu.matmul %35, %15, %cst_15 {dimension_numbers = #tpu.dot_dimension_numbers<[2], [1], [1], [2], [0, 0, 0, 1, 1, 2], [0], [0]>} : vector<2x8x8xbf16>, vector<2x8x32xbf16>, vector<2x8x32xf32> -> vector<2x8x32xf32>
    %c0_16 = arith.constant 0 : index
    %c0_17 = arith.constant 0 : index
    %c0_18 = arith.constant 0 : index
    %37 = vector.load %arg6[%c0_16, %c0_17, %c0_18] : memref<2x8x8xf32, #tpu.memory_space<vmem>>, vector<2x8x8xf32>
    tpu.vector_store %arg6[%c0_16, %c0_17, %c0_18], %34 {strides = array<i32>} : memref<2x8x8xf32, #tpu.memory_space<vmem>>, vector<2x8x8xf32>,
    %c0_19 = arith.constant 0 : index
    %c0_20 = arith.constant 0 : index
    %c0_21 = arith.constant 0 : index
    %38 = vector.load %arg5[%c0_19, %c0_20, %c0_21] : memref<2x8x32xf32, #tpu.memory_space<vmem>>, vector<2x8x32xf32>
    tpu.vector_store %arg5[%c0_19, %c0_20, %c0_21], %36 {strides = array<i32>} : memref<2x8x32xf32, #tpu.memory_space<vmem>>, vector<2x8x32xf32>,
    return
  }
  func.func @transform_0(%arg0: i32) -> (i32, i32, i32) {
    %c0_i32 = arith.constant 0 : i32
    %c0_i32_0 = arith.constant 0 : i32
    %c0_i32_1 = arith.constant 0 : i32
    return %arg0, %c0_i32, %c0_i32_0 : i32, i32, i32
  }
  func.func @transform_1(%arg0: i32) -> (i32, i32) {
    %c0_i32 = arith.constant 0 : i32
    %c0_i32_0 = arith.constant 0 : i32
    %c0_i32_1 = arith.constant 0 : i32
    return %c0_i32, %c0_i32_0 : i32, i32
  }
  func.func @transform_2(%arg0: i32) -> (i32, i32) {
    %c0_i32 = arith.constant 0 : i32
    %c0_i32_0 = arith.constant 0 : i32
    %c0_i32_1 = arith.constant 0 : i32
    return %c0_i32, %c0_i32_0 : i32, i32
  }
  func.func @transform_3(%arg0: i32) -> (i32, i32) {
    %c0_i32 = arith.constant 0 : i32
    %c0_i32_0 = arith.constant 0 : i32
    %c0_i32_1 = arith.constant 0 : i32
    return %c0_i32, %c0_i32_0 : i32, i32
  }
  func.func @transform_4(%arg0: i32) -> (i32, i32, i32) {
    %c0_i32 = arith.constant 0 : i32
    %c0_i32_0 = arith.constant 0 : i32
    %c0_i32_1 = arith.constant 0 : i32
    return %arg0, %c0_i32, %c0_i32_0 : i32, i32, i32
  }
  func.func @transform_5(%arg0: i32) -> (i32, i32, i32) {
    %c0_i32 = arith.constant 0 : i32
    %c0_i32_0 = arith.constant 0 : i32
    %c0_i32_1 = arith.constant 0 : i32
    return %arg0, %c0_i32, %c0_i32_0 : i32, i32, i32
  }
}

</mosaic_0001>

<llo_original>
// kernel: tpu_custom_call.1
$region0: #{tpu_custom_call.1}
  #allocation0 [shape = 'u32[]', space=smem, size = 0x4, offset = 0x4, fixed_abs, tag = 'smem constant byte address 0x4 - core index']
  #allocation1 [shape = 'u32[144,128]{1,0:T(1,128)}', space=vmem, size = 0x12000, scoped, tag = 'internal scratch']
  %s0 = inlined_call_operand.hbm [shape: bf16[2,8,32], index: 0, kind: input, shape index: {}]
  %s1 = inlined_call_operand.hbm [shape: bf16[32,32], index: 1, kind: input, shape index: {}]
  %s2 = inlined_call_operand.hbm [shape: bf16[32,32], index: 2, kind: input, shape index: {}]
  %s3 = inlined_call_operand.hbm [shape: bf16[32,32], index: 3, kind: input, shape index: {}]
  %s4 = inlined_call_operand.hbm [shape: f32[2,8,32], index: 4, kind: output, shape index: {0}]
  %s5 = inlined_call_operand.hbm [shape: f32[2,8,8], index: 5, kind: output, shape index: {1}]
  %6 = xla_tuple %s4, %s5
  %s7 = sld [smem:[#allocation0]]
  $region50: #{tpu_custom_call.1} parent=0
    _
  %s9 = ssub.s32 1, %s7
  %s10 = scalar_select 0, %s9, %s7
  $region1: #{tpu_custom_call.1} parent=0
    #allocation2 [shape = 'u8[4096]{0}', space=vmem, size = 0x1000, scoped, tag = 'input window, operand 0, single buffered']
    #allocation3 [shape = 's32[1]{0}', space=sflag, size = 0x4, scoped, tag = 'scoped memory for tpu_custom_call.1']
    #allocation4 [shape = 's32[1]{0}', space=sflag, size = 0x4, scoped, tag = 'scoped memory for tpu_custom_call.1']
    #allocation5 [shape = 'u8[8192]{0}', space=vmem, size = 0x2000, scoped, tag = 'input window, operand 1, single buffered']
    #allocation6 [shape = 's32[1]{0}', space=sflag, size = 0x4, scoped, tag = 'scoped memory for tpu_custom_call.1']
    #allocation7 [shape = 'u8[8192]{0}', space=vmem, size = 0x2000, scoped, tag = 'input window, operand 2, single buffered']
    #allocation8 [shape = 'u8[8192]{0}', space=vmem, size = 0x2000, scoped, tag = 'input window, operand 3, single buffered']
    #allocation9 [shape = 's32[1]{0}', space=sflag, size = 0x4, scoped, tag = 'scoped memory for tpu_custom_call.1']
    #allocation10 [shape = 'u8[8192]{0}', space=vmem, size = 0x2000, scoped, tag = 'output window, operand 0, single buffered']
    #allocation11 [shape = 'u8[8192]{0}', space=vmem, size = 0x2000, scoped, tag = 'output window, operand 1, single buffered']
    #allocation12 [shape = 's32[1]{0}', space=sflag, size = 0x4, scoped, tag = 'scoped memory for tpu_custom_call.1']
    %11 = vsyncpa [#allocation3], 0
    %12 = vsyncpa [#allocation6], 0
    %13 = vsyncpa [#allocation9], 0
    %14 = vsyncpa [#allocation4], 0
    %15 = vsyncpa [#allocation12], 0
    // Predicated region
    $region2: #{tpu_custom_call.1} parent=1 // pred_check
      _
    $region3: #{tpu_custom_call.1} parent=1 // pred_check_branch
      %17 = sbr.rel (0) target = $region5
    $region4: #{tpu_custom_call.1} parent=1 // pred_region
      %s19 = ssub.s32 128, 128
      %20 = vsyncadd [#allocation3], %s19
      %s21 = sshll.u32 [#allocation2], 4
      %s22 = int_to_ptr.vmem [resolvable:$true] %s21
      %27 = dma.hbm_to_vmem [thread:$0]  %s0, 128, %s22, [#allocation3], 64, 64, 4
    $region5: #{tpu_custom_call.1} parent=1 // pred_fallthru
      _
    // Predicated region
    $region6: #{tpu_custom_call.1} parent=1 // pred_check
      _
    $region7: #{tpu_custom_call.1} parent=1 // pred_check_branch
      %29 = sbr.rel (0) target = $region9
    $region8: #{tpu_custom_call.1} parent=1 // pred_region
      %s31 = ssub.s32 256, 256
      %32 = vsyncadd [#allocation6], %s31
      %s33 = sshll.u32 [#allocation5], 4
      %s34 = int_to_ptr.vmem [resolvable:$true] %s33
      %39 = dma.hbm_to_vmem [thread:$0]  %s1, 256, %s34, [#allocation6], 64, 64, 4
    $region9: #{tpu_custom_call.1} parent=1 // pred_fallthru
      _
    // Predicated region
    $region10: #{tpu_custom_call.1} parent=1 // pred_check
      _
    $region11: #{tpu_custom_call.1} parent=1 // pred_check_branch
      %41 = sbr.rel (0) target = $region13
    $region12: #{tpu_custom_call.1} parent=1 // pred_region
      %s43 = ssub.s32 256, 256
      %44 = vsyncadd [#allocation6], %s43
      %s45 = sshll.u32 [#allocation7], 4
      %s46 = int_to_ptr.vmem [resolvable:$true] %s45
      %51 = dma.hbm_to_vmem [thread:$0]  %s2, 256, %s46, [#allocation6], 64, 64, 4
    $region13: #{tpu_custom_call.1} parent=1 // pred_fallthru
      _
    // Predicated region
    $region14: #{tpu_custom_call.1} parent=1 // pred_check
      _
    $region15: #{tpu_custom_call.1} parent=1 // pred_check_branch
      %53 = sbr.rel (0) target = $region17
    $region16: #{tpu_custom_call.1} parent=1 // pred_region
      %s55 = ssub.s32 256, 256
      %56 = vsyncadd [#allocation9], %s55
      %s57 = sshll.u32 [#allocation8], 4
      %s58 = int_to_ptr.vmem [resolvable:$true] %s57
      %63 = dma.hbm_to_vmem [thread:$0]  %s3, 256, %s58, [#allocation9], 64, 64, 4
    $region17: #{tpu_custom_call.1} parent=1 // pred_fallthru
      _
    // Predicated region
    $region18: #{tpu_custom_call.1} parent=1 // pred_check
      _
    $region19: #{tpu_custom_call.1} parent=1 // pred_check_branch
      %65 = sbr.rel (0) target = $region21
    $region20: #{tpu_custom_call.1} parent=1 // pred_region
      %66 = dma.done [#allocation3], 128
    $region21: #{tpu_custom_call.1} parent=1 // pred_fallthru
      _
    // Predicated region
    $region22: #{tpu_custom_call.1} parent=1 // pred_check
      _
    $region23: #{tpu_custom_call.1} parent=1 // pred_check_branch
      %68 = sbr.rel (0) target = $region25
    $region24: #{tpu_custom_call.1} parent=1 // pred_region
      %69 = dma.done [#allocation6], 256
    $region25: #{tpu_custom_call.1} parent=1 // pred_fallthru
      _
    // Predicated region
    $region26: #{tpu_custom_call.1} parent=1 // pred_check
      _
    $region27: #{tpu_custom_call.1} parent=1 // pred_check_branch
      %71 = sbr.rel (0) target = $region29
    $region28: #{tpu_custom_call.1} parent=1 // pred_region
      %72 = dma.done [#allocation6], 256
    $region29: #{tpu_custom_call.1} parent=1 // pred_fallthru
      _
    // Predicated region
    $region30: #{tpu_custom_call.1} parent=1 // pred_check
      _
    $region31: #{tpu_custom_call.1} parent=1 // pred_check_branch
      %74 = sbr.rel (0) target = $region33
    $region32: #{tpu_custom_call.1} parent=1 // pred_region
      %75 = dma.done [#allocation9], 256
    $region33: #{tpu_custom_call.1} parent=1 // pred_fallthru
      _
    %v77 = vld [vmem:[#allocation2] sm:$0xf]
    %v78 = vld [vmem:[#allocation2 + $0x4] sm:$0xf]
    %v79 = vld [vmem:[#allocation5] sm:$0xf]
    %v80 = vld [vmem:[#allocation5 + $0x4] sm:$0xf]
    %v81 = vld [vmem:[#allocation5 + $0x8] sm:$0xf]
    %v82 = vld [vmem:[#allocation5 + $0xc] sm:$0xf]
    %v85 = vunpack.c.l.b16 %v77
    %v86 = vunpack.c.l.b16 %v78
    %v87 = vpack.c.b16 %v86, %v85
    %v92 = vunpack.c.l.b16 %v79
    %v93 = vunpack.c.l.b16 %v80
    %v94 = vunpack.c.l.b16 %v81
    %v95 = vunpack.c.l.b16 %v82
    %v96 = vpack.c.b16 %v93, %v92
    %v97 = vpack.c.b16 %v95, %v94
    %vm100 = vcmask 261120
    %v102 = vsel %vm100, %v87, 0
    %104 = vmatprep.subr.bf16.mxu0 0
    %105 = vmatpush1.bf16.msra.mxu0 0
    %106 = vmatprep.subr.bf16.mxu0 0
    %107 = vmatpush1.bf16.msra.mxu0 0
    %108 = vmatprep.subr.bf16.mxu0 0
    %109 = vmatpush1.bf16.msra.mxu0 0
    %110 = vmatprep.subr.bf16.mxu0 0
    %111 = vmatpush1.bf16.msra.mxu0 0
    %112 = vmatprep.subr.bf16.mxu0 0
    %113 = vmatpush1.bf16.msra.mxu0 0
    %114 = vmatprep.subr.bf16.mxu0 0
    %115 = vmatpush1.bf16.msra.mxu0 0
    %116 = vmatprep.subr.bf16.mxu0 0
    %117 = vmatpush1.bf16.msra.mxu0 %v97
    %118 = vmatprep.subr.bf16.mxu0 0
    %119 = vmatpush1.bf16.msra.mxu0 %v96
    %120 = vmatprep.subr.bf16.mxu0 0
    %121 = vmatpush2.bf16.msra.mxu0 0
    %122 = vmatprep.subr.bf16.mxu0 0
    %123 = vmatpush2.bf16.msra.mxu0 0
    %124 = vmatprep.subr.bf16.mxu0 0
    %125 = vmatpush2.bf16.msra.mxu0 0
    %126 = vmatprep.subr.bf16.mxu0 0
    %127 = vmatpush2.bf16.msra.mxu0 0
    %128 = vmatprep.subr.bf16.mxu0 0
    %129 = vmatpush2.bf16.msra.mxu0 0
    %130 = vmatprep.subr.bf16.mxu0 0
    %131 = vmatpush2.bf16.msra.mxu0 0
    %132 = vmatprep.subr.bf16.mxu0 0
    %133 = vmatpush2.bf16.msra.mxu0 0
    %134 = vmatprep.subr.bf16.mxu0 0
    %135 = vmatpush2.bf16.msra.mxu0 0
    %136 = vmatprep.mubr.bf16.mxu0 0
    %137 = vmatmul.mubr.bf16.gmra.mxu0 %v102
    %v138 = vpop.f32.mrf.mxu0
    %v139 = vadd.f32 0.0, %v138
    %v140 = vpop.f32.mrf.mxu0
    %v141 = vpop.f32.mrf.mxu0
    %v142 = vadd.f32 0.0, %v141
    %v143 = vpop.f32.mrf.mxu0
    %144 = vdwg.mxu0
    %v145 = vld [vmem:[#allocation7] sm:$0xf]
    %v146 = vld [vmem:[#allocation7 + $0x4] sm:$0xf]
    %v147 = vld [vmem:[#allocation7 + $0x8] sm:$0xf]
    %v148 = vld [vmem:[#allocation7 + $0xc] sm:$0xf]
    %v153 = vunpack.c.l.b16 %v145
    %v154 = vunpack.c.l.b16 %v146
    %v155 = vunpack.c.l.b16 %v147
    %v156 = vunpack.c.l.b16 %v148
    %v157 = vpack.c.b16 %v154, %v153
    %v158 = vpack.c.b16 %v156, %v155
    %161 = vmatprep.subr.bf16.mxu0 0
    %162 = vmatpush1.bf16.msra.mxu0 0
    %163 = vmatprep.subr.bf16.mxu0 0
    %164 = vmatpush1.bf16.msra.mxu0 0
    %165 = vmatprep.subr.bf16.mxu0 0
    %166 = vmatpush1.bf16.msra.mxu0 0
    %167 = vmatprep.subr.bf16.mxu0 0
    %168 = vmatpush1.bf16.msra.mxu0 0
    %169 = vmatprep.subr.bf16.mxu0 0
    %170 = vmatpush1.bf16.msra.mxu0 0
    %171 = vmatprep.subr.bf16.mxu0 0
    %172 = vmatpush1.bf16.msra.mxu0 0
    %173 = vmatprep.subr.bf16.mxu0 0
    %174 = vmatpush1.bf16.msra.mxu0 %v158
    %175 = vmatprep.subr.bf16.mxu0 0
    %176 = vmatpush1.bf16.msra.mxu0 %v157
    %177 = vmatprep.subr.bf16.mxu0 0
    %178 = vmatpush2.bf16.msra.mxu0 0
    %179 = vmatprep.subr.bf16.mxu0 0
    %180 = vmatpush2.bf16.msra.mxu0 0
    %181 = vmatprep.subr.bf16.mxu0 0
    %182 = vmatpush2.bf16.msra.mxu0 0
    %183 = vmatprep.subr.bf16.mxu0 0
    %184 = vmatpush2.bf16.msra.mxu0 0
    %185 = vmatprep.subr.bf16.mxu0 0
    %186 = vmatpush2.bf16.msra.mxu0 0
    %187 = vmatprep.subr.bf16.mxu0 0
    %188 = vmatpush2.bf16.msra.mxu0 0
    %189 = vmatprep.subr.bf16.mxu0 0
    %190 = vmatpush2.bf16.msra.mxu0 0
    %191 = vmatprep.subr.bf16.mxu0 0
    %192 = vmatpush2.bf16.msra.mxu0 0
    %193 = vmatprep.mubr.bf16.mxu0 0
    %194 = vmatmul.mubr.bf16.gmra.mxu0 %v102
    %v195 = vpop.f32.mrf.mxu0
    %v196 = vadd.f32 0.0, %v195
    %v197 = vpop.f32.mrf.mxu0
    %v198 = vpop.f32.mrf.mxu0
    %v199 = vadd.f32 0.0, %v198
    %v200 = vpop.f32.mrf.mxu0
    %201 = vdwg.mxu0
    %v202 = vld [vmem:[#allocation8] sm:$0xf]
    %v203 = vld [vmem:[#allocation8 + $0x4] sm:$0xf]
    %v204 = vld [vmem:[#allocation8 + $0x8] sm:$0xf]
    %v205 = vld [vmem:[#allocation8 + $0xc] sm:$0xf]
    %v210 = vunpack.c.l.b16 %v202
    %v211 = vunpack.c.l.b16 %v203
    %v212 = vunpack.c.l.b16 %v204
    %v213 = vunpack.c.l.b16 %v205
    %v214 = vpack.c.b16 %v211, %v210
    %v215 = vpack.c.b16 %v213, %v212
    %218 = vmatprep.subr.bf16.mxu0 0
    %219 = vmatpush1.bf16.msra.mxu0 0
    %220 = vmatprep.subr.bf16.mxu0 0
    %221 = vmatpush1.bf16.msra.mxu0 0
    %222 = vmatprep.subr.bf16.mxu0 0
    %223 = vmatpush1.bf16.msra.mxu0 0
    %224 = vmatprep.subr.bf16.mxu0 0
    %225 = vmatpush1.bf16.msra.mxu0 0
    %226 = vmatprep.subr.bf16.mxu0 0
    %227 = vmatpush1.bf16.msra.mxu0 0
    %228 = vmatprep.subr.bf16.mxu0 0
    %229 = vmatpush1.bf16.msra.mxu0 0
    %230 = vmatprep.subr.bf16.mxu0 0
    %231 = vmatpush1.bf16.msra.mxu0 %v215
    %232 = vmatprep.subr.bf16.mxu0 0
    %233 = vmatpush1.bf16.msra.mxu0 %v214
    %234 = vmatprep.subr.bf16.mxu0 0
    %235 = vmatpush2.bf16.msra.mxu0 0
    %236 = vmatprep.subr.bf16.mxu0 0
    %237 = vmatpush2.bf16.msra.mxu0 0
    %238 = vmatprep.subr.bf16.mxu0 0
    %239 = vmatpush2.bf16.msra.mxu0 0
    %240 = vmatprep.subr.bf16.mxu0 0
    %241 = vmatpush2.bf16.msra.mxu0 0
    %242 = vmatprep.subr.bf16.mxu0 0
    %243 = vmatpush2.bf16.msra.mxu0 0
    %244 = vmatprep.subr.bf16.mxu0 0
    %245 = vmatpush2.bf16.msra.mxu0 0
    %246 = vmatprep.subr.bf16.mxu0 0
    %247 = vmatpush2.bf16.msra.mxu0 0
    %248 = vmatprep.subr.bf16.mxu0 0
    %249 = vmatpush2.bf16.msra.mxu0 0
    %250 = vmatprep.mubr.bf16.mxu0 0
    %251 = vmatmul.mubr.bf16.gmra.mxu0 %v102
    %v252 = vpop.f32.mrf.mxu0
    %v253 = vadd.f32 0.0, %v252
    %v254 = vpop.f32.mrf.mxu0
    %v255 = vpop.f32.mrf.mxu0
    %v256 = vadd.f32 0.0, %v255
    %v257 = vpop.f32.mrf.mxu0
    %258 = vdwg.mxu0
    %v259 = vmul.f32 %v139, 0.17677669
    %v260 = vmul.f32 %v142, 0.17677669
    %v261 = vpack.c.bf16 %v259, %v259
    %v262 = vpack.c.bf16 %v260, %v260
    %v263 = vpack.c.bf16 %v196, %v196
    %v264 = vpack.c.bf16 %v199, %v199
    %v265 = vpack.c.bf16 %v253, %v253
    %v266 = vpack.c.bf16 %v256, %v256
    %v268 = vsel %vm100, %v261, 0
    %v271 = vsel %vm100, %v263, 0
    %273 = vmatprep.subr.bf16.mxu0 0
    %274 = vmatpush1.bf16.xpose.msra.mxu0 0
    %275 = vmatprep.subr.bf16.mxu0 0
    %276 = vmatpush1.bf16.xpose.msra.mxu0 0
    %277 = vmatprep.subr.bf16.mxu0 0
    %278 = vmatpush1.bf16.xpose.msra.mxu0 0
    %279 = vmatprep.subr.bf16.mxu0 0
    %280 = vmatpush1.bf16.xpose.msra.mxu0 0
    %281 = vmatprep.subr.bf16.mxu0 0
    %282 = vmatpush1.bf16.xpose.msra.mxu0 0
    %283 = vmatprep.subr.bf16.mxu0 0
    %284 = vmatpush1.bf16.xpose.msra.mxu0 0
    %285 = vmatprep.subr.bf16.mxu0 0
    %286 = vmatpush1.bf16.xpose.msra.mxu0 0
    %287 = vmatprep.subr.bf16.mxu0 0
    %288 = vmatpush1.bf16.xpose.msra.mxu0 %v271
    %289 = vmatprep.subr.bf16.mxu0 0
    %290 = vmatpush2.bf16.xpose.msra.mxu0 0
    %291 = vmatprep.subr.bf16.mxu0 0
    %292 = vmatpush2.bf16.xpose.msra.mxu0 0
    %293 = vmatprep.subr.bf16.mxu0 0
    %294 = vmatpush2.bf16.xpose.msra.mxu0 0
    %295 = vmatprep.subr.bf16.mxu0 0
    %296 = vmatpush2.bf16.xpose.msra.mxu0 0
    %297 = vmatprep.subr.bf16.mxu0 0
    %298 = vmatpush2.bf16.xpose.msra.mxu0 0
    %299 = vmatprep.subr.bf16.mxu0 0
    %300 = vmatpush2.bf16.xpose.msra.mxu0 0
    %301 = vmatprep.subr.bf16.mxu0 0
    %302 = vmatpush2.bf16.xpose.msra.mxu0 0
    %303 = vmatprep.subr.bf16.mxu0 0
    %304 = vmatpush2.bf16.xpose.msra.mxu0 0
    %305 = vmatprep.mubr.bf16.mxu0 0
    %306 = vmatmul.mubr.bf16.gmra.mxu0 %v268
    %v307 = vpop.f32.mrf.mxu0
    %v308 = vadd.f32 0.0, %v307
    %v309 = vpop.f32.mrf.mxu0
    %v310 = vpop.f32.mrf.mxu0
    %v311 = vpop.f32.mrf.mxu0
    %312 = vdwg.mxu0
    %v314 = vsel %vm100, %v262, 0
    %v317 = vsel %vm100, %v264, 0
    %319 = vmatprep.subr.bf16.mxu0 0
    %320 = vmatpush1.bf16.xpose.msra.mxu0 0
    %321 = vmatprep.subr.bf16.mxu0 0
    %322 = vmatpush1.bf16.xpose.msra.mxu0 0
    %323 = vmatprep.subr.bf16.mxu0 0
    %324 = vmatpush1.bf16.xpose.msra.mxu0 0
    %325 = vmatprep.subr.bf16.mxu0 0
    %326 = vmatpush1.bf16.xpose.msra.mxu0 0
    %327 = vmatprep.subr.bf16.mxu0 0
    %328 = vmatpush1.bf16.xpose.msra.mxu0 0
    %329 = vmatprep.subr.bf16.mxu0 0
    %330 = vmatpush1.bf16.xpose.msra.mxu0 0
    %331 = vmatprep.subr.bf16.mxu0 0
    %332 = vmatpush1.bf16.xpose.msra.mxu0 0
    %333 = vmatprep.subr.bf16.mxu0 0
    %334 = vmatpush1.bf16.xpose.msra.mxu0 %v317
    %335 = vmatprep.subr.bf16.mxu0 0
    %336 = vmatpush2.bf16.xpose.msra.mxu0 0
    %337 = vmatprep.subr.bf16.mxu0 0
    %338 = vmatpush2.bf16.xpose.msra.mxu0 0
    %339 = vmatprep.subr.bf16.mxu0 0
    %340 = vmatpush2.bf16.xpose.msra.mxu0 0
    %341 = vmatprep.subr.bf16.mxu0 0
    %342 = vmatpush2.bf16.xpose.msra.mxu0 0
    %343 = vmatprep.subr.bf16.mxu0 0
    %344 = vmatpush2.bf16.xpose.msra.mxu0 0
    %345 = vmatprep.subr.bf16.mxu0 0
    %346 = vmatpush2.bf16.xpose.msra.mxu0 0
    %347 = vmatprep.subr.bf16.mxu0 0
    %348 = vmatpush2.bf16.xpose.msra.mxu0 0
    %349 = vmatprep.subr.bf16.mxu0 0
    %350 = vmatpush2.bf16.xpose.msra.mxu0 0
    %351 = vmatprep.mubr.bf16.mxu0 0
    %352 = vmatmul.mubr.bf16.gmra.mxu0 %v314
    %v353 = vpop.f32.mrf.mxu0
    %v354 = vadd.f32 0.0, %v353
    %v355 = vpop.f32.mrf.mxu0
    %v356 = vpop.f32.mrf.mxu0
    %v357 = vpop.f32.mrf.mxu0
    %358 = vdwg.mxu0
    %v359 = vlaneseq
    %v360 = vshrl.u32 %v359, 7
    %v361 = vlaneseq
    %v362 = vand.u32 %v361, 127
    %vm363 = vcmp.ge.s32.totalorder %v360, %v362
    %v364 = vsel %vm363, 1, 0
    %vm365 = vcmp.eq.s32.totalorder %v364, 1
    %v366 = vsel %vm365, %v308, -3.4028235e+38
    %v367 = vsel %vm365, %v354, -3.4028235e+38
    %vm368 = vcmask 64512
    %v369 = vsel %vm368, %v366, -inf
    %370 = vmax.xlane.f32.xlu0 %v369
    %v371 = vpop.xlane.xlu0 %370
    %v372 = vsel %vm368, %v367, -inf
    %373 = vmax.xlane.f32.xlu0 %v372
    %v374 = vpop.xlane.xlu0 %373
    %v375 = vsub.f32 %v366, %v371
    %v376 = vsub.f32 %v367, %v374
    %v377 = vmul.f32 %v375, 1.442695
    %v378 = vpow.pop %v377
    %v379 = vmul.f32 %v376, 1.442695
    %v380 = vpow.pop %v379
    %v381 = vsel %vm368, %v378, 0.0
    %382 = vadd.xlane.f32.xlu0 %v381
    %v383 = vpop.xlane.xlu0 %382
    %v384 = vsel %vm368, %v380, 0.0
    %385 = vadd.xlane.f32.xlu0 %v384
    %v386 = vpop.xlane.xlu0 %385
    %v387 = vrcp.pop %v383
    %v388 = vrcp.pop %v386
    %v389 = vmul.f32 %v378, %v387
    %v390 = vmul.f32 %v380, %v388
    %v391 = vpack.c.bf16 %v389, %v389
    %v392 = vpack.c.bf16 %v390, %v390
    %v394 = vsel %vm368, %v391, 0
    %vm396 = vcmask 1043456
    %v398 = vsel %vm396, %v265, 0
    %400 = vmatprep.subr.bf16.mxu0 0
    %401 = vmatpush1.bf16.msra.mxu0 0
    %402 = vmatprep.subr.bf16.mxu0 0
    %403 = vmatpush1.bf16.msra.mxu0 0
    %404 = vmatprep.subr.bf16.mxu0 0
    %405 = vmatpush1.bf16.msra.mxu0 0
    %406 = vmatprep.subr.bf16.mxu0 0
    %407 = vmatpush1.bf16.msra.mxu0 0
    %408 = vmatprep.subr.bf16.mxu0 0
    %409 = vmatpush1.bf16.msra.mxu0 0
    %410 = vmatprep.subr.bf16.mxu0 0
    %411 = vmatpush1.bf16.msra.mxu0 0
    %412 = vmatprep.subr.bf16.mxu0 0
    %413 = vmatpush1.bf16.msra.mxu0 0
    %414 = vmatprep.subr.bf16.mxu0 0
    %415 = vmatpush1.bf16.msra.mxu0 %v398
    %416 = vmatprep.subr.bf16.mxu0 0
    %417 = vmatpush2.bf16.msra.mxu0 0
    %418 = vmatprep.subr.bf16.mxu0 0
    %419 = vmatpush2.bf16.msra.mxu0 0
    %420 = vmatprep.subr.bf16.mxu0 0
    %421 = vmatpush2.bf16.msra.mxu0 0
    %422 = vmatprep.subr.bf16.mxu0 0
    %423 = vmatpush2.bf16.msra.mxu0 0
    %424 = vmatprep.subr.bf16.mxu0 0
    %425 = vmatpush2.bf16.msra.mxu0 0
    %426 = vmatprep.subr.bf16.mxu0 0
    %427 = vmatpush2.bf16.msra.mxu0 0
    %428 = vmatprep.subr.bf16.mxu0 0
    %429 = vmatpush2.bf16.msra.mxu0 0
    %430 = vmatprep.subr.bf16.mxu0 0
    %431 = vmatpush2.bf16.msra.mxu0 0
    %432 = vmatprep.mubr.bf16.mxu0 0
    %433 = vmatmul.mubr.bf16.gmra.mxu0 %v394
    %v434 = vpop.f32.mrf.mxu0
    %v435 = vadd.f32 0.0, %v434
    %v436 = vpop.f32.mrf.mxu0
    %v437 = vpop.f32.mrf.mxu0
    %v438 = vpop.f32.mrf.mxu0
    %439 = vdwg.mxu0
    %v441 = vsel %vm368, %v392, 0
    %v444 = vsel %vm396, %v266, 0
    %446 = vmatprep.subr.bf16.mxu0 0
    %447 = vmatpush1.bf16.msra.mxu0 0
    %448 = vmatprep.subr.bf16.mxu0 0
    %449 = vmatpush1.bf16.msra.mxu0 0
    %450 = vmatprep.subr.bf16.mxu0 0
    %451 = vmatpush1.bf16.msra.mxu0 0
    %452 = vmatprep.subr.bf16.mxu0 0
    %453 = vmatpush1.bf16.msra.mxu0 0
    %454 = vmatprep.subr.bf16.mxu0 0
    %455 = vmatpush1.bf16.msra.mxu0 0
    %456 = vmatprep.subr.bf16.mxu0 0
    %457 = vmatpush1.bf16.msra.mxu0 0
    %458 = vmatprep.subr.bf16.mxu0 0
    %459 = vmatpush1.bf16.msra.mxu0 0
    %460 = vmatprep.subr.bf16.mxu0 0
    %461 = vmatpush1.bf16.msra.mxu0 %v444
    %462 = vmatprep.subr.bf16.mxu0 0
    %463 = vmatpush2.bf16.msra.mxu0 0
    %464 = vmatprep.subr.bf16.mxu0 0
    %465 = vmatpush2.bf16.msra.mxu0 0
    %466 = vmatprep.subr.bf16.mxu0 0
    %467 = vmatpush2.bf16.msra.mxu0 0
    %468 = vmatprep.subr.bf16.mxu0 0
    %469 = vmatpush2.bf16.msra.mxu0 0
    %470 = vmatprep.subr.bf16.mxu0 0
    %471 = vmatpush2.bf16.msra.mxu0 0
    %472 = vmatprep.subr.bf16.mxu0 0
    %473 = vmatpush2.bf16.msra.mxu0 0
    %474 = vmatprep.subr.bf16.mxu0 0
    %475 = vmatpush2.bf16.msra.mxu0 0
    %476 = vmatprep.subr.bf16.mxu0 0
    %477 = vmatpush2.bf16.msra.mxu0 0
    %478 = vmatprep.mubr.bf16.mxu0 0
    %479 = vmatmul.mubr.bf16.gmra.mxu0 %v441
    %v480 = vpop.f32.mrf.mxu0
    %v481 = vadd.f32 0.0, %v480
    %v482 = vpop.f32.mrf.mxu0
    %v483 = vpop.f32.mrf.mxu0
    %v484 = vpop.f32.mrf.mxu0
    %485 = vdwg.mxu0
    %486 = vst.msk [vmem:[#allocation11] sm:$0xff] %vm368, %v389
    %487 = vst.msk [vmem:[#allocation11 + $0x8] sm:$0xff] %vm368, %v390
    %488 = vst.msk [vmem:[#allocation10] sm:$0xff] %vm100, %v435
    %489 = vst.msk [vmem:[#allocation10 + $0x8] sm:$0xff] %vm100, %v481
    // Predicated region
    $region34: #{tpu_custom_call.1} parent=1 // pred_check
      _
    $region35: #{tpu_custom_call.1} parent=1 // pred_check_branch
      %491 = sbr.rel (0) target = $region37
    $region36: #{tpu_custom_call.1} parent=1 // pred_region
      %s493 = ssub.s32 256, 256
      %494 = vsyncadd [#allocation4], %s493
      %s495 = sshll.u32 [#allocation10], 4
      %s496 = int_to_ptr.vmem [resolvable:$true] %s495
      %501 = dma.vmem_to_hbm [thread:$0]  %s496, 256, %s4, [#allocation4], 128, 128, 8
    $region37: #{tpu_custom_call.1} parent=1 // pred_fallthru
      _
    // Predicated region
    $region38: #{tpu_custom_call.1} parent=1 // pred_check
      _
    $region39: #{tpu_custom_call.1} parent=1 // pred_check_branch
      %503 = sbr.rel (0) target = $region41
    $region40: #{tpu_custom_call.1} parent=1 // pred_region
      %s505 = ssub.s32 256, 256
      %506 = vsyncadd [#allocation12], %s505
      %s507 = sshll.u32 [#allocation11], 4
      %s508 = int_to_ptr.vmem [resolvable:$true] %s507
      %513 = dma.vmem_to_hbm [thread:$0]  %s508, 256, %s5, [#allocation12], 128, 128, 8
    $region41: #{tpu_custom_call.1} parent=1 // pred_fallthru
      _
    // Predicated region
    $region42: #{tpu_custom_call.1} parent=1 // pred_check
      _
    $region43: #{tpu_custom_call.1} parent=1 // pred_check_branch
      %515 = sbr.rel (0) target = $region45
    $region44: #{tpu_custom_call.1} parent=1 // pred_region
      %516 = dma.done [#allocation4], 256
    $region45: #{tpu_custom_call.1} parent=1 // pred_fallthru
      _
    // Predicated region
    $region46: #{tpu_custom_call.1} parent=1 // pred_check
      _
    $region47: #{tpu_custom_call.1} parent=1 // pred_check_branch
      %518 = sbr.rel (0) target = $region49
    $region48: #{tpu_custom_call.1} parent=1 // pred_region
      %519 = dma.done [#allocation12], 256
    $region49: #{tpu_custom_call.1} parent=1 // pred_fallthru
      _
    %520 = vsyncpa [#allocation3], 1
    %521 = vsyncpa [#allocation6], 1
    %522 = vsyncpa [#allocation9], 1
    %523 = vsyncpa [#allocation4], 1
    %524 = vsyncpa [#allocation12], 1

</llo_original>
